<compile_context>
chip_gen: v5e
topology: v5e:2x2
jax: 0.10.0
libtpu: 0.0.40
codegen_flags: <defaults>
</compile_context>

<pallas_src>
import functools

import jax
import jax.numpy as jnp
from jax.experimental import pallas as pl
from jax.experimental.pallas import tpu as pltpu

_MIB = 1024 * 1024


def _se_block_kernel(x_ref, w1t_ref, w2t_ref, out_ref, acc_ref, *,
                     inv_hw, hw_rem):
    # grid = (batch_tiles, hw_tiles); reduction (hw) axis is last.
    k = pl.program_id(1)
    last = pl.num_programs(1) - 1

    @pl.when(k == 0)
    def _init():
        acc_ref[...] = jnp.zeros_like(acc_ref)

    if hw_rem == 0:
        # hw divides evenly into tiles: plain partial sum every step.
        acc_ref[...] += jnp.sum(x_ref[...].astype(jnp.float32), axis=-1)
    else:
        # Only the last grid step covers a partial tile: mask the
        # out-of-bounds lanes (unspecified contents) to zero before summing.
        @pl.when(k != last)
        def _full_tile():
            acc_ref[...] += jnp.sum(x_ref[...].astype(jnp.float32), axis=-1)

        @pl.when(k == last)
        def _tail_tile():
            x = x_ref[...].astype(jnp.float32)
            col = jax.lax.broadcasted_iota(jnp.int32, x.shape, dimension=2)
            x = jnp.where(col < hw_rem, x, 0.0)
            acc_ref[...] += jnp.sum(x, axis=-1)

    @pl.when(k == last)
    def _finalize():
        # AdaptiveAvgPool2d(1): single scale by 1/(h*w) at the end.
        pooled = acc_ref[...] * inv_hw                       # (tile_b, c) f32
        w1t = w1t_ref[...]
        w2t = w2t_ref[...]
        # The MXU takes bf16 natively; only matmul in f32 when the weights
        # are f32 (preferred_element_type keeps f32 accumulation either way).
        lhs1 = pooled if w1t.dtype == jnp.float32 else pooled.astype(w1t.dtype)
        hidden = jnp.dot(lhs1, w1t, preferred_element_type=jnp.float32)
        hidden = jnp.maximum(hidden, 0.0)
        lhs2 = hidden if w2t.dtype == jnp.float32 else hidden.astype(w2t.dtype)
        gate = jnp.dot(lhs2, w2t, preferred_element_type=jnp.float32)
        out_ref[...] = jax.nn.sigmoid(gate).astype(out_ref.dtype)


def _generation_budgets():
    """(x double-buffer budget bytes, vmem_limit_bytes) for this TPU gen."""
    vmem_capacity = None
    try:
        info = pltpu.get_tpu_info()
        vmem_capacity = getattr(info, "vmem_capacity_bytes", None)
    except Exception:  # best-effort query; fall back to conservative numbers
        vmem_capacity = None
    if vmem_capacity is not None and vmem_capacity >= 100 * _MIB:
        # v5e / v6e: 128 MiB physical VMEM.
        return 32 * _MIB, 64 * _MIB
    # v7x (64 MiB physical VMEM) or unknown: stay conservative.
    return 16 * _MIB, 48 * _MIB


def _pick_tile_b(b, c, itemsize, x_budget_bytes):
    """Largest multiple-of-8 divisor of b (<= 32) that leaves >= 2 batch
    blocks (keeps both v7x TensorCores fed) and fits a minimal 128-lane x
    tile in the budget; otherwise b itself (single full-dim block)."""
    cands = [t for t in (32, 24, 16, 8) if t <= b // 2 and b % t == 0]
    if not cands:
        return b
    for t in cands:                          # descending
        if 2 * t * c * 128 * itemsize <= x_budget_bytes:
            return t
    return cands[-1]


def _pick_tile_hw(tile_b, c, hw, itemsize, x_budget_bytes):
    """Largest 128-multiple hw tile whose double-buffered x block fits the
    budget; the full extent if it fits (or if hw < 128, where a 128-multiple
    tile is impossible).  Returns (tile_hw, hw % tile_hw)."""
    per_lane = 2 * tile_b * c * itemsize     # bytes per hw element, x2 buffers
    max_hw = x_budget_bytes // max(1, per_lane)
    if max_hw >= hw or hw < 128:
        return hw, 0                         # whole spatial extent, no mask
    tile_hw = max(128, (min(max_hw, hw) // 128) * 128)
    return tile_hw, hw % tile_hw


def se_block(x, w1, w2, *, x_budget_bytes=None):
    """SE_block forward.

    x:  (b, c, h, w)  NCHW, like PyTorch (f32 or bf16).
    w1: (c//ratio, c) PyTorch nn.Linear weight (out_features, in_features).
    w2: (c, c//ratio) PyTorch nn.Linear weight.
    returns: (b, c, 1, 1) sigmoid gate (the module returns y, not x * y).
    `x_budget_bytes` is a test-only override of the x tiling budget.
    """
    b, c, h, w = x.shape
    hw = h * w
    hidden = w1.shape[0]
    x_itemsize = jnp.dtype(x.dtype).itemsize
    w_itemsize = jnp.dtype(w1.dtype).itemsize
    w_bytes = (w1.size + w2.size) * w_itemsize

    gen_budget, vmem_limit = _generation_budgets()
    if x_budget_bytes is None:
        # Weights stay VMEM-resident (double-buffered by the pipeline); take
        # their footprint out of the x budget so big-c / small-ratio fits.
        x_budget = max(2 * _MIB, gen_budget - 2 * w_bytes)
    else:
        x_budget = x_budget_bytes

    tile_b = _pick_tile_b(b, c, x_itemsize, x_budget)
    tile_hw, hw_rem = _pick_tile_hw(tile_b, c, hw, x_itemsize, x_budget)

    x_flat = x.reshape(b, c, hw)             # metadata-only reshape, no copy
    w1_t = w1.T                              # (c, hidden)  VMEM-resident
    w2_t = w2.T                              # (hidden, c)  VMEM-resident

    grid = (b // tile_b, pl.cdiv(hw, tile_hw))
    kernel = functools.partial(_se_block_kernel,
                               inv_hw=1.0 / float(hw), hw_rem=hw_rem)

    cost = pl.CostEstimate(
        flops=int(2 * b * c * hw + 2 * b * c * hidden + 2 * b * hidden * c),
        transcendentals=int(b * c),
        bytes_accessed=int(x.size * x_itemsize + w_bytes + b * c * x_itemsize),
    )

    out = pl.pallas_call(
        kernel,
        out_shape=jax.ShapeDtypeStruct((b, c), x.dtype),
        grid_spec=pltpu.PrefetchScalarGridSpec(
            num_scalar_prefetch=0,
            grid=grid,
            in_specs=[
                # x: tiled over (batch, spatial); full channel extent per tile.
                pl.BlockSpec((tile_b, c, tile_hw), lambda i, k: (i, 0, k)),
                # Weights: full-array blocks, constant index_map -> resident.
                pl.BlockSpec((c, hidden), lambda i, k: (0, 0)),
                pl.BlockSpec((hidden, c), lambda i, k: (0, 0)),
            ],
            # Output block is constant across the reduction axis (accumulator
            # semantics); written only in the finalize step.
            out_specs=pl.BlockSpec((tile_b, c), lambda i, k: (i, 0)),
            scratch_shapes=[pltpu.VMEM((tile_b, c), jnp.float32)],
        ),
        compiler_params=pltpu.CompilerParams(
            dimension_semantics=("parallel", "arbitrary"),
            vmem_limit_bytes=vmem_limit,
        ),
        cost_estimate=cost,
    )(x_flat, w1_t, w2_t)

    return out.reshape(b, c, 1, 1)


def _reference(x, w1, w2):
    pooled = jnp.mean(x.astype(jnp.float32), axis=(2, 3))
    y = jax.nn.sigmoid(
        jnp.maximum(pooled @ w1.T.astype(jnp.float32), 0.0)
        @ w2.T.astype(jnp.float32))
    return y.reshape(x.shape[0], x.shape[1], 1, 1).astype(x.dtype)


if __name__ == "__main__":
    key = jax.random.PRNGKey(0)
    kx, k1, k2, kx2 = jax.random.split(key, 4)

    # Case 1: small shapes matching the module defaults (ratio=1).
    b, c, h, w = 2, 4, 16, 16
    ratio = 1
    hidden = c // ratio

    x = jax.random.normal(kx, (b, c, h, w), dtype=jnp.float32)
    # nn.Linear weights: (out_features, in_features), no bias.
    w1 = jax.random.normal(k1, (hidden, c), dtype=jnp.float32) * 0.1
    w2 = jax.random.normal(k2, (c, hidden), dtype=jnp.float32) * 0.1

    y = se_block(x, w1, w2)
    jax.block_until_ready(y)
    ref = _reference(x, w1, w2)
    assert y.shape == (b, c, 1, 1)
    assert jnp.allclose(y, ref, atol=1e-5, rtol=1e-5)

    # Case 2: exercise the multi-step reduction with a masked partial last hw
    # tile (hw=144, tile_hw=128) and >1 batch block, via a tiny forced budget.
    b2, h2, w2_ = 16, 12, 12
    x2 = jax.random.normal(kx2, (b2, c, h2, w2_), dtype=jnp.float32)
    y2 = se_block(x2, w1, w2, x_budget_bytes=4096)
    jax.block_until_ready(y2)
    ref2 = _reference(x2, w1, w2)
    assert y2.shape == (b2, c, 1, 1)
    assert jnp.allclose(y2, ref2, atol=1e-5, rtol=1e-5)

    print("KERNEL_OK")
</pallas_src>

<mosaic_0001>
module attributes {stable_mosaic.version = 11 : i64} {
  func.func @_se_block_kernel(%arg0: i32, %arg1: i32, %arg2: memref<2x4x256xf32, #tpu.memory_space<vmem>>, %arg3: memref<4x4xf32, #tpu.memory_space<vmem>>, %arg4: memref<4x4xf32, #tpu.memory_space<vmem>>, %arg5: memref<2x4xf32, #tpu.memory_space<vmem>>, %arg6: memref<2x4xf32, #tpu.memory_space<vmem>>) attributes {dimension_semantics = [#tpu.dimension_semantics<parallel>, #tpu.dimension_semantics<arbitrary>], iteration_bounds = array<i64: 1, 1>, scalar_prefetch = 0 : i64, scratch_operands = 1 : i64, tpu.core_type = #tpu.core_type<tc>, window_params = [{transform_indices = @transform_0, window_bounds = array<i64: 2, 4, 256>}, {pipeline_mode = #tpu.pipeline_mode<synchronous>, transform_indices = @transform_1, window_bounds = array<i64: 4, 4>}, {pipeline_mode = #tpu.pipeline_mode<synchronous>, transform_indices = @transform_2, window_bounds = array<i64: 4, 4>}, {transform_indices = @transform_3, window_bounds = array<i64: 2, 4>}]} {
    %c0_i32 = arith.constant 0 : i32
    %0 = arith.cmpi eq, %arg1, %c0_i32 : i32
    %1 = arith.extui %0 : i1 to i32
    %c0_i32_0 = arith.constant 0 : i32
    %2 = arith.cmpi ne, %1, %c0_i32_0 : i32
    scf.if %2 {
      %cst_9 = arith.constant 0.000000e+00 : f32
      %11 = vector.broadcast %cst_9 : f32 to vector<2x4xf32>
      %c0_10 = arith.constant 0 : index
      %c0_11 = arith.constant 0 : index
      %12 = vector.load %arg6[%c0_10, %c0_11] : memref<2x4xf32, #tpu.memory_space<vmem>>, vector<2x4xf32>
      tpu.vector_store %arg6[%c0_10, %c0_11], %11 {strides = array<i32>} : memref<2x4xf32, #tpu.memory_space<vmem>>, vector<2x4xf32>,
    } else {
    }
    %c0 = arith.constant 0 : index
    %c0_1 = arith.constant 0 : index
    %3 = vector.load %arg6[%c0, %c0_1] : memref<2x4xf32, #tpu.memory_space<vmem>>, vector<2x4xf32>
    %c0_2 = arith.constant 0 : index
    %c0_3 = arith.constant 0 : index
    %c0_4 = arith.constant 0 : index
    %4 = vector.load %arg2[%c0_2, %c0_3, %c0_4] : memref<2x4x256xf32, #tpu.memory_space<vmem>>, vector<2x4x256xf32>
    %cst = arith.constant dense<0.000000e+00> : vector<2x4xf32>
    %5 = vector.multi_reduction <add>, %4, %cst [2] : vector<2x4x256xf32> to vector<2x4xf32>
    %6 = arith.addf %3, %5 : vector<2x4xf32>
    %c0_5 = arith.constant 0 : index
    %c0_6 = arith.constant 0 : index
    %7 = vector.load %arg6[%c0_5, %c0_6] : memref<2x4xf32, #tpu.memory_space<vmem>>, vector<2x4xf32>
    tpu.vector_store %arg6[%c0_5, %c0_6], %6 {strides = array<i32>} : memref<2x4xf32, #tpu.memory_space<vmem>>, vector<2x4xf32>,
    %c0_i32_7 = arith.constant 0 : i32
    %8 = arith.cmpi eq, %arg1, %c0_i32_7 : i32
    %9 = arith.extui %8 : i1 to i32
    %c0_i32_8 = arith.constant 0 : i32
    %10 = arith.cmpi ne, %9, %c0_i32_8 : i32
    scf.if %10 {
      %c0_9 = arith.constant 0 : index
      %c0_10 = arith.constant 0 : index
      %11 = vector.load %arg6[%c0_9, %c0_10] : memref<2x4xf32, #tpu.memory_space<vmem>>, vector<2x4xf32>
      %cst_11 = arith.constant 3.906250e-03 : f32
      %12 = vector.broadcast %cst_11 : f32 to vector<2x4xf32>
      %13 = arith.mulf %11, %12 : vector<2x4xf32>
      %c0_12 = arith.constant 0 : index
      %c0_13 = arith.constant 0 : index
      %14 = vector.load %arg3[%c0_12, %c0_13] : memref<4x4xf32, #tpu.memory_space<vmem>>, vector<4x4xf32>
      %c0_14 = arith.constant 0 : index
      %c0_15 = arith.constant 0 : index
      %15 = vector.load %arg4[%c0_14, %c0_15] : memref<4x4xf32, #tpu.memory_space<vmem>>, vector<4x4xf32>
      %cst_16 = arith.constant dense<0.000000e+00> : vector<2x4xf32>
      %16 = tpu.matmul %13, %14, %cst_16 {dimension_numbers = #tpu.dot_dimension_numbers<[1], [0], [0], [1], [0, 0, 1, 1], [], []>} : vector<2x4xf32>, vector<4x4xf32>, vector<2x4xf32> -> vector<2x4xf32>
      %cst_17 = arith.constant 0.000000e+00 : f32
      %17 = vector.broadcast %cst_17 : f32 to vector<2x4xf32>
      %18 = arith.maximumf %16, %17 : vector<2x4xf32>
      %cst_18 = arith.constant dense<0.000000e+00> : vector<2x4xf32>
      %19 = tpu.matmul %18, %15, %cst_18 {dimension_numbers = #tpu.dot_dimension_numbers<[1], [0], [0], [1], [0, 0, 1, 1], [], []>} : vector<2x4xf32>, vector<4x4xf32>, vector<2x4xf32> -> vector<2x4xf32>
      %20 = arith.negf %19 : vector<2x4xf32>
      %21 = math.exp %20 : vector<2x4xf32>
      %cst_19 = arith.constant 1.000000e+00 : f32
      %22 = vector.broadcast %cst_19 : f32 to vector<2x4xf32>
      %23 = arith.addf %22, %21 : vector<2x4xf32>
      %24 = arith.divf %22, %23 : vector<2x4xf32>
      %c0_20 = arith.constant 0 : index
      %c0_21 = arith.constant 0 : index
      %25 = vector.load %arg5[%c0_20, %c0_21] : memref<2x4xf32, #tpu.memory_space<vmem>>, vector<2x4xf32>
      tpu.vector_store %arg5[%c0_20, %c0_21], %24 {strides = array<i32>} : memref<2x4xf32, #tpu.memory_space<vmem>>, vector<2x4xf32>,
    } else {
    }
    return
  }
  func.func @transform_0(%arg0: i32, %arg1: i32) -> (i32, i32, i32) {
    %c0_i32 = arith.constant 0 : i32
    %c0_i32_0 = arith.constant 0 : i32
    return %arg0, %c0_i32, %arg1 : i32, i32, i32
  }
  func.func @transform_1(%arg0: i32, %arg1: i32) -> (i32, i32) {
    %c0_i32 = arith.constant 0 : i32
    %c0_i32_0 = arith.constant 0 : i32
    %c0_i32_1 = arith.constant 0 : i32
    return %c0_i32, %c0_i32_0 : i32, i32
  }
  func.func @transform_2(%arg0: i32, %arg1: i32) -> (i32, i32) {
    %c0_i32 = arith.constant 0 : i32
    %c0_i32_0 = arith.constant 0 : i32
    %c0_i32_1 = arith.constant 0 : i32
    return %c0_i32, %c0_i32_0 : i32, i32
  }
  func.func @transform_3(%arg0: i32, %arg1: i32) -> (i32, i32) {
    %c0_i32 = arith.constant 0 : i32
    %c0_i32_0 = arith.constant 0 : i32
    return %arg0, %c0_i32 : i32, i32
  }
}

</mosaic_0001>

<llo_original>
// kernel: tpu_custom_call.1
$region0: #{tpu_custom_call.1}
  #allocation0 [shape = 'u32[]', space=smem, size = 0x4, offset = 0x4, fixed_abs, tag = 'smem constant byte address 0x4 - core index']
  #allocation1 [shape = 'u32[72,128]{1,0:T(1,128)}', space=vmem, size = 0x9000, scoped, tag = 'internal scratch']
  #allocation2 [shape = 'f32[2,4]{1,0:T(2,128)}', space=vmem, size = 0x400, scoped, tag = 'scratch operand']
  %s0 = inlined_call_operand.hbm [shape: f32[2,4,256], index: 0, kind: input, shape index: {}]
  %s1 = inlined_call_operand.hbm [shape: f32[4,4], index: 1, kind: input, shape index: {}]
  %s2 = inlined_call_operand.hbm [shape: f32[4,4], index: 2, kind: input, shape index: {}]
  %s3 = inlined_call_operand.hbm [shape: f32[2,4], index: 3, kind: output, shape index: {}]
  %s4 = sld [smem:[#allocation0]]
  $region42: #{tpu_custom_call.1} parent=0
    _
  %s6 = ssub.s32 1, %s4
  %s7 = scalar_select 0, %s6, %s4
  $region1: #{tpu_custom_call.1} parent=0
    #allocation3 [shape = 'u8[8192]{0}', space=vmem, size = 0x2000, scoped, tag = 'input window, operand 0, single buffered']
    #allocation4 [shape = 's32[1]{0}', space=sflag, size = 0x4, scoped, tag = 'scoped memory for tpu_custom_call.1']
    #allocation5 [shape = 's32[1]{0}', space=sflag, size = 0x4, scoped, tag = 'scoped memory for tpu_custom_call.1']
    #allocation6 [shape = 'u8[2048]{0}', space=vmem, size = 0x800, scoped, tag = 'input window, operand 1, single buffered']
    #allocation7 [shape = 's32[1]{0}', space=sflag, size = 0x4, scoped, tag = 'scoped memory for tpu_custom_call.1']
    #allocation8 [shape = 'u8[2048]{0}', space=vmem, size = 0x800, scoped, tag = 'input window, operand 2, single buffered']
    #allocation9 [shape = 'u8[1024]{0}', space=vmem, size = 0x400, scoped, tag = 'output window, operand 0, single buffered']
    %8 = vsyncpa [#allocation4], 0
    %9 = vsyncpa [#allocation7], 0
    %10 = vsyncpa [#allocation5], 0
    // Predicated region
    $region2: #{tpu_custom_call.1} parent=1 // pred_check
      _
    $region3: #{tpu_custom_call.1} parent=1 // pred_check_branch
      %12 = sbr.rel (0) target = $region5
    $region4: #{tpu_custom_call.1} parent=1 // pred_region
      %14 = vsyncadd [#allocation4], 0
      %s15 = sshll.u32 %s0, 4
      %s16 = int_to_ptr.hbm [resolvable:$true] %s15
      %s17 = sshll.u32 [#allocation3], 4
      %s18 = int_to_ptr.vmem [resolvable:$true] %s17
      %23 = dma.hbm_to_vmem [thread:$0]  %s16, 256, %s18, [#allocation4], 128, 128, 8
    $region5: #{tpu_custom_call.1} parent=1 // pred_fallthru
      _
    // Predicated region
    $region6: #{tpu_custom_call.1} parent=1 // pred_check
      _
    $region7: #{tpu_custom_call.1} parent=1 // pred_check_branch
      %25 = sbr.rel (0) target = $region9
    $region8: #{tpu_custom_call.1} parent=1 // pred_region
      %27 = vsyncadd [#allocation7], 0
      %s29 = sshll.u32 %s1, 4
      %s30 = int_to_ptr.hbm [resolvable:$true] %s29
      %s31 = sshll.u32 [#allocation6], 4
      %s32 = int_to_ptr.vmem [resolvable:$true] %s31
      %34 = dma.hbm_to_vmem [thread:$0]  %s30, 64, %s32, [#allocation7]
    $region9: #{tpu_custom_call.1} parent=1 // pred_fallthru
      _
    // Predicated region
    $region10: #{tpu_custom_call.1} parent=1 // pred_check
      _
    $region11: #{tpu_custom_call.1} parent=1 // pred_check_branch
      %36 = sbr.rel (0) target = $region13
    $region12: #{tpu_custom_call.1} parent=1 // pred_region
      %38 = vsyncadd [#allocation7], 0
      %s40 = sshll.u32 %s2, 4
      %s41 = int_to_ptr.hbm [resolvable:$true] %s40
      %s42 = sshll.u32 [#allocation8], 4
      %s43 = int_to_ptr.vmem [resolvable:$true] %s42
      %45 = dma.hbm_to_vmem [thread:$0]  %s41, 64, %s43, [#allocation7]
    $region13: #{tpu_custom_call.1} parent=1 // pred_fallthru
      _
    // Predicated region
    $region14: #{tpu_custom_call.1} parent=1 // pred_check
      _
    $region15: #{tpu_custom_call.1} parent=1 // pred_check_branch
      %47 = sbr.rel (0) target = $region17
    $region16: #{tpu_custom_call.1} parent=1 // pred_region
      %49 = dma.done [#allocation4], 256
    $region17: #{tpu_custom_call.1} parent=1 // pred_fallthru
      _
    // Predicated region
    $region18: #{tpu_custom_call.1} parent=1 // pred_check
      _
    $region19: #{tpu_custom_call.1} parent=1 // pred_check_branch
      %51 = sbr.rel (0) target = $region21
    $region20: #{tpu_custom_call.1} parent=1 // pred_region
      %53 = dma.done [#allocation7], 64
    $region21: #{tpu_custom_call.1} parent=1 // pred_fallthru
      _
    // Predicated region
    $region22: #{tpu_custom_call.1} parent=1 // pred_check
      _
    $region23: #{tpu_custom_call.1} parent=1 // pred_check_branch
      %55 = sbr.rel (0) target = $region25
    $region24: #{tpu_custom_call.1} parent=1 // pred_region
      %57 = dma.done [#allocation7], 64
    $region25: #{tpu_custom_call.1} parent=1 // pred_fallthru
      _
    %p58 = scmp.eq.s32.totalorder 0, 0
    // Predicated region
    $region26: #{tpu_custom_call.1} parent=1 // pred_check
      %p59 = pneg %p58
    $region27: #{tpu_custom_call.1} parent=1 // pred_check_branch
      %61 = sbr.rel (%p59) target = $region29
    $region28: #{tpu_custom_call.1} parent=1 // pred_region
      %vm62 = vcmask 25600
      %63 = vst.msk [vmem:[#allocation2] sm:$0x3] %vm62, 0.0
    $region29: #{tpu_custom_call.1} parent=1 // pred_fallthru
      _
    %v64 = vld [vmem:[#allocation2] sm:$0x3]
    %v65 = vld [vmem:[#allocation3] sm:$0xff]
    %v66 = vld [vmem:[#allocation3 + $0x8] sm:$0xff]
    %69 = vst [vmem:[#allocation1] ss:$2 sm:$0xff] %v65
    %v70 = vld.sshfl [vmem:[#allocation1] sm:$0xff pattern:$0x75316420]
    %v71 = vld.sshfl [vmem:[#allocation1 + $0x8] sm:$0xff pattern:$0x75316420]
    %s72 = scalar_lea.vmem [#allocation1], 16
    %73 = vst [vmem:[%s72] ss:$2 sm:$0xff] %v66
    %v74 = vld.sshfl [vmem:[#allocation1 + $0x10] sm:$0xff pattern:$0x75316420]
    %v75 = vld.sshfl [vmem:[#allocation1 + $0x18] sm:$0xff pattern:$0x75316420]
    %vm80 = vcmask 1043456
    %v81 = vsel %vm80, %v70, 0.0
    %v82 = vsel %vm80, %v71, 0.0
    %v83 = vadd.f32 %v81, %v82
    %84 = vadd.xlane.f32.xlu0 %v83
    %v85 = vpop.xlane.xlu0 %84
    %v86 = vsel %vm80, %v74, 0.0
    %v87 = vsel %vm80, %v75, 0.0
    %v88 = vadd.f32 %v86, %v87
    %89 = vadd.xlane.f32.xlu0 %v88
    %v90 = vpop.xlane.xlu0 %89
    %v93 = vlaneseq
    %v94 = vand.u32 %v93, 127
    %v95 = vperm.slane %v85, %v94
    %v96 = vperm.slane %v90, %v94
    %vm97 = vcmask 1041409
    %v98 = vsel %vm97, %v96, %v95
    %v100 = vadd.f32 %v64, %v98
    %vm101 = vcmask 25600
    %102 = vst.msk [vmem:[#allocation2] sm:$0x3] %vm101, %v100
    // Predicated region
    $region30: #{tpu_custom_call.1} parent=1 // pred_check
      %p103 = pneg %p58
    $region31: #{tpu_custom_call.1} parent=1 // pred_check_branch
      %105 = sbr.rel (%p103) target = $region33
    $region32: #{tpu_custom_call.1} parent=1 // pred_region
      %v106 = vld [vmem:[#allocation2] sm:$0x3]
      %v107 = vmul.f32 %v106, 0.00390625
      %v108 = vld [vmem:[#allocation6] sm:$0xf]
      %v109 = vld [vmem:[#allocation8] sm:$0xf]
      %vm110 = vcmask 31744
      %v112 = vsel %vm110, %v107, 0
      %v115 = vsel %vm80, %v108, 0
      %117 = vmatpush.msra.mxu0 0.0
      %118 = vmatpush.msra.mxu0 0.0
      %119 = vmatpush.msra.mxu0 0.0
      %120 = vmatpush.msra.mxu0 0.0
      %121 = vmatpush.msra.mxu0 0.0
      %122 = vmatpush.msra.mxu0 0.0
      %123 = vmatpush.msra.mxu0 0.0
      %124 = vmatpush.msra.mxu0 0.0
      %125 = vmatpush.msra.mxu0 0.0
      %126 = vmatpush.msra.mxu0 0.0
      %127 = vmatpush.msra.mxu0 0.0
      %128 = vmatpush.msra.mxu0 0.0
      %129 = vmatpush.msra.mxu0 0.0
      %130 = vmatpush.msra.mxu0 0.0
      %131 = vmatpush.msra.mxu0 0.0
      %132 = vmatpush.msra.mxu0 %v115
      %133 = vmatmul.f32.gmra.mxu0 %v112
      %v134 = vpop.f32.mrf.mxu0
      %v135 = vadd.f32 0.0, %v134
      %136 = vdwg.mxu0
      %v137 = vmax.f32 %v135, 0.0
      %v139 = vsel %vm110, %v137, 0
      %v142 = vsel %vm80, %v109, 0
      %144 = vmatpush.msra.mxu0 0.0
      %145 = vmatpush.msra.mxu0 0.0
      %146 = vmatpush.msra.mxu0 0.0
      %147 = vmatpush.msra.mxu0 0.0
      %148 = vmatpush.msra.mxu0 0.0
      %149 = vmatpush.msra.mxu0 0.0
      %150 = vmatpush.msra.mxu0 0.0
      %151 = vmatpush.msra.mxu0 0.0
      %152 = vmatpush.msra.mxu0 0.0
      %153 = vmatpush.msra.mxu0 0.0
      %154 = vmatpush.msra.mxu0 0.0
      %155 = vmatpush.msra.mxu0 0.0
      %156 = vmatpush.msra.mxu0 0.0
      %157 = vmatpush.msra.mxu0 0.0
      %158 = vmatpush.msra.mxu0 0.0
      %159 = vmatpush.msra.mxu0 %v142
      %160 = vmatmul.f32.gmra.mxu0 %v139
      %v161 = vpop.f32.mrf.mxu0
      %v162 = vadd.f32 0.0, %v161
      %163 = vdwg.mxu0
      %v164 = vxor.u32 %v162, 2147483648
      %v165 = vmul.f32 %v164, 1.442695
      %v166 = vpow.pop %v165
      %v167 = vadd.f32 %v166, 1.0
      %v168 = vrcp.pop %v167
      %v169 = vmul.f32 %v167, %v168
      %v170 = vsub.f32 1.0, %v169
      %v171 = vmul.f32 %v168, %v170
      %v172 = vadd.f32 %v168, %v171
      %vm173 = vweird.f32 %v167
      %vm174 = vweird.f32 %v168
      %vm175 = vmor %vm173, %vm174
      %v176 = vsel %vm175, %v168, %v172
      %v177 = vand.u32 2147483647, %v167
      %vm178 = vcmp.eq.f32.partialorder %v177, 8.507059e+37
      %v179 = vand.u32 %v167, 2147483648
      %v180 = vor.u32 1.1754944e-38, %v179
      %v181 = vsel %vm178, %v180, %v176
      %v182 = vmul.f32 1.0, %v181
      %183 = vst.msk [vmem:[#allocation9] sm:$0x3] %vm101, %v182
    $region33: #{tpu_custom_call.1} parent=1 // pred_fallthru
      _
    // Predicated region
    $region34: #{tpu_custom_call.1} parent=1 // pred_check
      _
    $region35: #{tpu_custom_call.1} parent=1 // pred_check_branch
      %185 = sbr.rel (0) target = $region37
    $region36: #{tpu_custom_call.1} parent=1 // pred_region
      %187 = vsyncadd [#allocation5], 0
      %s189 = sshll.u32 [#allocation9], 4
      %s190 = int_to_ptr.vmem [resolvable:$true] %s189
      %s191 = sshll.u32 %s3, 4
      %s192 = int_to_ptr.hbm [resolvable:$true] %s191
      %194 = dma.vmem_to_hbm [thread:$0]  %s190, 32, %s192, [#allocation5]
    $region37: #{tpu_custom_call.1} parent=1 // pred_fallthru
      _
    // Predicated region
    $region38: #{tpu_custom_call.1} parent=1 // pred_check
      _
    $region39: #{tpu_custom_call.1} parent=1 // pred_check_branch
      %196 = sbr.rel (0) target = $region41
    $region40: #{tpu_custom_call.1} parent=1 // pred_region
      %198 = dma.done [#allocation5], 32
    $region41: #{tpu_custom_call.1} parent=1 // pred_fallthru
      _
    %199 = vsyncpa [#allocation4], 1
    %200 = vsyncpa [#allocation7], 1
    %201 = vsyncpa [#allocation5], 1

</llo_original>
